<compile_context>
chip_gen: v6e
topology: v6e:2x2x1
jax: 0.10.0
libtpu: 0.0.40
codegen_flags: <defaults>
</compile_context>

<pallas_src>
import functools

import jax
import jax.numpy as jnp
from jax.experimental import pallas as pl
from jax.experimental.pallas import tpu as pltpu


def _round_up(x, m):
    return ((x + m - 1) // m) * m


def _mlp_kernel(x_ref, w1_ref, b1_ref, w2_ref, b2_ref, o_ref):
    # matmul -> bias -> ReLU -> matmul -> bias.
    # Both dots hit the MXU with f32 accumulation; both operands of each dot
    # share the weight dtype (so param_dtype=bf16 uses the native bf16 MXU
    # path). Bias add / ReLU stay f32 on the VPU (v5e-friendly).
    x = x_ref[...].astype(w1_ref.dtype)
    h = jnp.dot(x, w1_ref[...], preferred_element_type=jnp.float32) + b1_ref[...]
    h = jnp.maximum(h, 0.0)                               # nn.ReLU()
    y = (jnp.dot(h.astype(w2_ref.dtype), w2_ref[...],
                 preferred_element_type=jnp.float32)
         + b2_ref[...])
    o_ref[...] = y.astype(o_ref.dtype)


def prepare_params(w1, b1, w2, b2, param_dtype=None):
    """One-time parameter prep (hoisted out of the per-call path).

    Pads the output dim to 128 lanes (lane-dense unmasked stores) and the
    hidden dim to a multiple of 128 (no-op for hidden=256), keeps biases as
    (1, N) rows for a single broadcast add, and optionally casts weights to
    param_dtype (e.g. jnp.bfloat16) for MXU throughput on v5e/v6e/v7x.
    All padding is zeros, so the math is unchanged.
    """
    k, hidden = w1.shape
    out_dim = w2.shape[1]
    h_pad = _round_up(hidden, 128)
    n_pad = _round_up(out_dim, 128)

    if param_dtype is not None:
        w1 = w1.astype(param_dtype)
        w2 = w2.astype(param_dtype)

    w1_p = jnp.pad(w1, ((0, 0), (0, h_pad - hidden)))                  # (20, 256)
    b1_p = jnp.pad(b1.reshape(1, hidden), ((0, 0), (0, h_pad - hidden)))
    w2_p = jnp.pad(w2, ((0, h_pad - hidden), (0, n_pad - out_dim)))    # (256, 128)
    b2_p = jnp.pad(b2.reshape(1, out_dim), ((0, 0), (0, n_pad - out_dim)))
    return {"w1": w1_p, "b1": b1_p, "w2": w2_p, "b2": b2_p}


@functools.partial(jax.jit, static_argnames=("out_dim", "block_batch"))
def my_sequential_forward(x, params, out_dim, block_batch=1024):
    """Fused Linear -> ReLU -> Linear forward on pre-padded params."""
    batch, k = x.shape
    w1_p, b1_p = params["w1"], params["b1"]
    w2_p, b2_p = params["w2"], params["b2"]
    h_pad = w1_p.shape[1]
    n_pad = w2_p.shape[1]

    # Batch: pad only to a sublane multiple of 8 (tiny / often a no-op).
    b_pad = _round_up(batch, 8)
    x_p = x if b_pad == batch else jnp.pad(x, ((0, b_pad - batch), (0, 0)))

    # Batch tile: big tiles amortize the ~0.35us/step overhead; for mid/large
    # batches ensure >= 2 grid steps so v7x can shard the batch axis across
    # its 2 TensorCores (no-op on v5e/v6e's single TC).
    tb_cap = _round_up(block_batch, 8)
    if b_pad > tb_cap:
        tb = tb_cap
    elif b_pad >= 256:
        tb = _round_up(pl.cdiv(b_pad, 2), 8)
    else:
        tb = b_pad
    grid = (pl.cdiv(b_pad, tb),)

    out = pl.pallas_call(
        _mlp_kernel,
        out_shape=jax.ShapeDtypeStruct((b_pad, n_pad), x.dtype),
        grid=grid,
        in_specs=[
            # Activations: tiled along batch; last dim 20 == full extent (no
            # lane padding -> ~6.4x less HBM read than padding K to 128).
            pl.BlockSpec((tb, k), lambda i: (i, 0)),
            # Weights / biases: same block every step -> VMEM-resident.
            pl.BlockSpec((k, h_pad), lambda i: (0, 0)),
            pl.BlockSpec((1, h_pad), lambda i: (0, 0)),
            pl.BlockSpec((h_pad, n_pad), lambda i: (0, 0)),
            pl.BlockSpec((1, n_pad), lambda i: (0, 0)),
        ],
        out_specs=pl.BlockSpec((tb, n_pad), lambda i: (i, 0)),
        compiler_params=pltpu.CompilerParams(
            dimension_semantics=("parallel",)),
    )(x_p, w1_p, b1_p, w2_p, b2_p)

    # Strip the batch / output-lane padding (keep this slice: padded rows and
    # lanes hold garbage/zeros that must never reach the caller).
    return out[:batch, :out_dim]


def _init_linear(key, fan_in, fan_out, dtype=jnp.float32):
    # Deterministic PyTorch-style init: U(-1/sqrt(fan_in), 1/sqrt(fan_in)).
    kw, kb = jax.random.split(key)
    bound = 1.0 / jnp.sqrt(jnp.asarray(fan_in, dtype))
    w = jax.random.uniform(kw, (fan_in, fan_out), dtype, -bound, bound)
    b = jax.random.uniform(kb, (1, fan_out), dtype, -bound, bound)
    return w, b


if __name__ == "__main__":
    key = jax.random.PRNGKey(0)
    kx, k1, k2 = jax.random.split(key, 3)

    # X = torch.rand(2, 20)  -> uniform [0, 1)
    x = jax.random.uniform(kx, (2, 20), jnp.float32)

    # Linear(20, 256) and Linear(256, 10) parameters.
    w1, b1 = _init_linear(k1, 20, 256)
    w2, b2 = _init_linear(k2, 256, 10)

    # Pad/cast once (hoisted out of the per-call path). Default keeps f32 for
    # exact parity with the reference; pass param_dtype=jnp.bfloat16 for MXU
    # throughput (then loosen the tolerance below accordingly).
    params = prepare_params(w1, b1, w2, b2)

    out = my_sequential_forward(x, params, out_dim=10)
    jax.block_until_ready(out)

    # Pure-JAX reference of the same forward pass.
    ref = jnp.maximum(x @ w1 + b1, 0.0) @ w2 + b2
    assert out.shape == (2, 10)
    assert jnp.allclose(out, ref, atol=1e-5, rtol=1e-5)

    print("KERNEL_OK")
</pallas_src>

<mosaic_0001>
module attributes {stable_mosaic.version = 11 : i64} {
  func.func @_mlp_kernel(%arg0: i32, %arg1: memref<8x20xf32, #tpu.memory_space<vmem>>, %arg2: memref<20x256xf32, #tpu.memory_space<vmem>>, %arg3: memref<1x256xf32, #tpu.memory_space<vmem>>, %arg4: memref<256x128xf32, #tpu.memory_space<vmem>>, %arg5: memref<1x128xf32, #tpu.memory_space<vmem>>, %arg6: memref<8x128xf32, #tpu.memory_space<vmem>>) attributes {dimension_semantics = [#tpu.dimension_semantics<parallel>], iteration_bounds = array<i64: 1>, scalar_prefetch = 0 : i64, scratch_operands = 0 : i64, tpu.core_type = #tpu.core_type<tc>, window_params = [{transform_indices = @transform_0, window_bounds = array<i64: 8, 20>}, {pipeline_mode = #tpu.pipeline_mode<synchronous>, transform_indices = @transform_1, window_bounds = array<i64: 20, 256>}, {pipeline_mode = #tpu.pipeline_mode<synchronous>, transform_indices = @transform_2, window_bounds = array<i64: 1, 256>}, {pipeline_mode = #tpu.pipeline_mode<synchronous>, transform_indices = @transform_3, window_bounds = array<i64: 256, 128>}, {pipeline_mode = #tpu.pipeline_mode<synchronous>, transform_indices = @transform_4, window_bounds = array<i64: 1, 128>}, {transform_indices = @transform_5, window_bounds = array<i64: 8, 128>}]} {
    %c0 = arith.constant 0 : index
    %c0_0 = arith.constant 0 : index
    %0 = vector.load %arg1[%c0, %c0_0] : memref<8x20xf32, #tpu.memory_space<vmem>>, vector<8x20xf32>
    %c0_1 = arith.constant 0 : index
    %c0_2 = arith.constant 0 : index
    %1 = vector.load %arg2[%c0_1, %c0_2] : memref<20x256xf32, #tpu.memory_space<vmem>>, vector<20x256xf32>
    %cst = arith.constant dense<0.000000e+00> : vector<8x256xf32>
    %2 = tpu.matmul %0, %1, %cst {dimension_numbers = #tpu.dot_dimension_numbers<[1], [0], [0], [1], [0, 0, 1, 1], [], []>} : vector<8x20xf32>, vector<20x256xf32>, vector<8x256xf32> -> vector<8x256xf32>
    %c0_3 = arith.constant 0 : index
    %c0_4 = arith.constant 0 : index
    %3 = vector.load %arg3[%c0_3, %c0_4] : memref<1x256xf32, #tpu.memory_space<vmem>>, vector<1x256xf32>
    %4 = vector.broadcast %3 : vector<1x256xf32> to vector<8x256xf32>
    %5 = arith.addf %2, %4 : vector<8x256xf32>
    %cst_5 = arith.constant 0.000000e+00 : f32
    %6 = vector.broadcast %cst_5 : f32 to vector<8x256xf32>
    %7 = arith.maximumf %5, %6 : vector<8x256xf32>
    %c0_6 = arith.constant 0 : index
    %c0_7 = arith.constant 0 : index
    %8 = vector.load %arg4[%c0_6, %c0_7] : memref<256x128xf32, #tpu.memory_space<vmem>>, vector<256x128xf32>
    %cst_8 = arith.constant dense<0.000000e+00> : vector<8x128xf32>
    %9 = tpu.matmul %7, %8, %cst_8 {dimension_numbers = #tpu.dot_dimension_numbers<[1], [0], [0], [1], [0, 0, 1, 1], [], []>} : vector<8x256xf32>, vector<256x128xf32>, vector<8x128xf32> -> vector<8x128xf32>
    %c0_9 = arith.constant 0 : index
    %c0_10 = arith.constant 0 : index
    %10 = vector.load %arg5[%c0_9, %c0_10] : memref<1x128xf32, #tpu.memory_space<vmem>>, vector<1x128xf32>
    %11 = vector.broadcast %10 : vector<1x128xf32> to vector<8x128xf32>
    %12 = arith.addf %9, %11 : vector<8x128xf32>
    %c0_11 = arith.constant 0 : index
    %c0_12 = arith.constant 0 : index
    %13 = vector.load %arg6[%c0_11, %c0_12] : memref<8x128xf32, #tpu.memory_space<vmem>>, vector<8x128xf32>
    tpu.vector_store %arg6[%c0_11, %c0_12], %12 {strides = array<i32>} : memref<8x128xf32, #tpu.memory_space<vmem>>, vector<8x128xf32>,
    return
  }
  func.func @transform_0(%arg0: i32) -> (i32, i32) {
    %c0_i32 = arith.constant 0 : i32
    %c0_i32_0 = arith.constant 0 : i32
    return %arg0, %c0_i32 : i32, i32
  }
  func.func @transform_1(%arg0: i32) -> (i32, i32) {
    %c0_i32 = arith.constant 0 : i32
    %c0_i32_0 = arith.constant 0 : i32
    %c0_i32_1 = arith.constant 0 : i32
    return %c0_i32, %c0_i32_0 : i32, i32
  }
  func.func @transform_2(%arg0: i32) -> (i32, i32) {
    %c0_i32 = arith.constant 0 : i32
    %c0_i32_0 = arith.constant 0 : i32
    %c0_i32_1 = arith.constant 0 : i32
    return %c0_i32, %c0_i32_0 : i32, i32
  }
  func.func @transform_3(%arg0: i32) -> (i32, i32) {
    %c0_i32 = arith.constant 0 : i32
    %c0_i32_0 = arith.constant 0 : i32
    %c0_i32_1 = arith.constant 0 : i32
    return %c0_i32, %c0_i32_0 : i32, i32
  }
  func.func @transform_4(%arg0: i32) -> (i32, i32) {
    %c0_i32 = arith.constant 0 : i32
    %c0_i32_0 = arith.constant 0 : i32
    %c0_i32_1 = arith.constant 0 : i32
    return %c0_i32, %c0_i32_0 : i32, i32
  }
  func.func @transform_5(%arg0: i32) -> (i32, i32) {
    %c0_i32 = arith.constant 0 : i32
    %c0_i32_0 = arith.constant 0 : i32
    return %arg0, %c0_i32 : i32, i32
  }
}

</mosaic_0001>

<llo_original>
// kernel: my_sequential_forward.1
$region0: #{my_sequential_forward.1}
  #allocation0 [shape = 'u32[]', space=smem, size = 0x4, offset = 0x4, fixed_abs, tag = 'smem constant byte address 0x4 - core index']
  #allocation1 [shape = 'u32[144,128]{1,0:T(1,128)}', space=vmem, size = 0x12000, scoped, tag = 'internal scratch']
  %s0 = inlined_call_operand.vmem [shape: f32[8,20], index: 0, kind: input, shape index: {}]
  %s1 = inlined_call_operand.hbm [shape: f32[20,256], index: 1, kind: input, shape index: {}]
  %s2 = inlined_call_operand.vmem [shape: f32[1,256], index: 2, kind: input, shape index: {}]
  %s3 = inlined_call_operand.hbm [shape: f32[256,128], index: 3, kind: input, shape index: {}]
  %s4 = inlined_call_operand.vmem [shape: f32[1,128], index: 4, kind: input, shape index: {}]
  %s5 = inlined_call_operand.vmem [shape: f32[8,128], index: 5, kind: output, shape index: {}]
  %s6 = sld [smem:[#allocation0]]
  $region38: #{my_sequential_forward.1} parent=0
    _
  %s8 = ssub.s32 1, %s6
  %s9 = scalar_select 0, %s8, %s6
  $region1: #{my_sequential_forward.1} parent=0
    #allocation2 [shape = 'u8[24576]{0}', space=vmem, size = 0x6000, scoped, tag = 'input window, operand 1, single buffered']
    #allocation3 [shape = 's32[1]{0}', space=sflag, size = 0x4, scoped, tag = 'scoped memory for my_sequential_forward.1']
    #allocation4 [shape = 'u8[131072]{0}', space=vmem, size = 0x20000, scoped, tag = 'input window, operand 3, single buffered']
    #allocation5 [shape = 's32[1]{0}', space=sflag, size = 0x4, scoped, tag = 'scoped memory for my_sequential_forward.1']
    %10 = vsyncpa [#allocation3], 0
    %11 = vsyncpa [#allocation5], 0
    // Predicated region
    $region2: #{my_sequential_forward.1} parent=1 // pred_check
      _
    $region3: #{my_sequential_forward.1} parent=1 // pred_check_branch
      %13 = sbr.rel (0) target = $region5
    $region4: #{my_sequential_forward.1} parent=1 // pred_region
      _
    $region5: #{my_sequential_forward.1} parent=1 // pred_fallthru
      _
    // Predicated region
    $region6: #{my_sequential_forward.1} parent=1 // pred_check
      _
    $region7: #{my_sequential_forward.1} parent=1 // pred_check_branch
      %15 = sbr.rel (0) target = $region9
    $region8: #{my_sequential_forward.1} parent=1 // pred_region
      %s17 = ssub.s32 768, 768
      %18 = vsyncadd [#allocation3], %s17
      %s19 = sshll.u32 [#allocation2], 4
      %s20 = int_to_ptr.vmem [resolvable:$true] %s19
      %25 = dma.hbm_to_vmem [thread:$0]  %s1, 768, %s20, [#allocation3], 256, 256, 16
    $region9: #{my_sequential_forward.1} parent=1 // pred_fallthru
      _
    // Predicated region
    $region10: #{my_sequential_forward.1} parent=1 // pred_check
      _
    $region11: #{my_sequential_forward.1} parent=1 // pred_check_branch
      %27 = sbr.rel (0) target = $region13
    $region12: #{my_sequential_forward.1} parent=1 // pred_region
      _
    $region13: #{my_sequential_forward.1} parent=1 // pred_fallthru
      _
    // Predicated region
    $region14: #{my_sequential_forward.1} parent=1 // pred_check
      _
    $region15: #{my_sequential_forward.1} parent=1 // pred_check_branch
      %29 = sbr.rel (0) target = $region17
    $region16: #{my_sequential_forward.1} parent=1 // pred_region
      %s31 = ssub.s32 4096, 4096
      %32 = vsyncadd [#allocation5], %s31
      %s33 = sshll.u32 [#allocation4], 4
      %s34 = int_to_ptr.vmem [resolvable:$true] %s33
      %39 = dma.hbm_to_vmem [thread:$0]  %s3, 4096, %s34, [#allocation5], 128, 128, 8
    $region17: #{my_sequential_forward.1} parent=1 // pred_fallthru
      _
    // Predicated region
    $region18: #{my_sequential_forward.1} parent=1 // pred_check
      _
    $region19: #{my_sequential_forward.1} parent=1 // pred_check_branch
      %41 = sbr.rel (0) target = $region21
    $region20: #{my_sequential_forward.1} parent=1 // pred_region
      _
    $region21: #{my_sequential_forward.1} parent=1 // pred_fallthru
      _
    // Predicated region
    $region22: #{my_sequential_forward.1} parent=1 // pred_check
      _
    $region23: #{my_sequential_forward.1} parent=1 // pred_check_branch
      %43 = sbr.rel (0) target = $region25
    $region24: #{my_sequential_forward.1} parent=1 // pred_region
      %44 = dma.done [#allocation3], 768
    $region25: #{my_sequential_forward.1} parent=1 // pred_fallthru
      _
    // Predicated region
    $region26: #{my_sequential_forward.1} parent=1 // pred_check
      _
    $region27: #{my_sequential_forward.1} parent=1 // pred_check_branch
      %46 = sbr.rel (0) target = $region29
    $region28: #{my_sequential_forward.1} parent=1 // pred_region
      %47 = dma.done [#allocation5], 4096
    $region29: #{my_sequential_forward.1} parent=1 // pred_fallthru
      _
    %v48 = vld [vmem:[%s0] sm:$0xff]
    %v49 = vld [vmem:[#allocation2] sm:$0xff]
    %v50 = vld [vmem:[#allocation2 + $0x8] sm:$0xff]
    %v51 = vld [vmem:[#allocation2 + $0x10] sm:$0xff]
    %v52 = vld [vmem:[#allocation2 + $0x18] sm:$0xff]
    %v53 = vld [vmem:[#allocation2 + $0x20] sm:$0xf]
    %v54 = vld [vmem:[#allocation2 + $0x28] sm:$0xf]
    %v55 = vld [vmem:[%s2] sm:$0x3]
    %v57 = vlaneseq
    %v58 = vshrl.u32 %v57, 7
    %v59 = vsub.s32 0, %v58
    %v60 = vrot.slane %v55, %v59
    %v61 = vlaneseq
    %v62 = vshrl.u32 %v61, 7
    %v63 = vsub.s32 1, %v62
    %v64 = vrot.slane %v55, %v63
    %vm67 = vcmask 162816
    %v69 = vsel %vm67, %v48, 0
    %vm71 = vcmask 1043456
    %v73 = vsel %vm71, %v53, 0
    %v76 = vsel %vm71, %v54, 0
    %78 = vmatprep.subr.mxu0 0.0
    %79 = vmatpush1.msra.mxu0 0.0
    %80 = vmatprep.subr.mxu0 0.0
    %81 = vmatpush1.msra.mxu0 0.0
    %82 = vmatprep.subr.mxu0 0.0
    %83 = vmatpush1.msra.mxu0 0.0
    %84 = vmatprep.subr.mxu0 0.0
    %85 = vmatpush1.msra.mxu0 0.0
    %86 = vmatprep.subr.mxu0 0.0
    %87 = vmatpush1.msra.mxu0 0.0
    %88 = vmatprep.subr.mxu0 0.0
    %89 = vmatpush1.msra.mxu0 0.0
    %90 = vmatprep.subr.mxu0 0.0
    %91 = vmatpush1.msra.mxu0 0.0
    %92 = vmatprep.subr.mxu0 0.0
    %93 = vmatpush1.msra.mxu0 0.0
    %94 = vmatprep.subr.mxu0 0.0
    %95 = vmatpush1.msra.mxu0 0.0
    %96 = vmatprep.subr.mxu0 0.0
    %97 = vmatpush1.msra.mxu0 0.0
    %98 = vmatprep.subr.mxu0 0.0
    %99 = vmatpush1.msra.mxu0 0.0
    %100 = vmatprep.subr.mxu0 0.0
    %101 = vmatpush1.msra.mxu0 0.0
    %102 = vmatprep.subr.mxu0 0.0
    %103 = vmatpush1.msra.mxu0 0.0
    %104 = vmatprep.subr.mxu0 %v76
    %105 = vmatpush1.msra.mxu0 %v73
    %106 = vmatprep.subr.mxu0 %v52
    %107 = vmatpush1.msra.mxu0 %v51
    %108 = vmatprep.subr.mxu0 %v50
    %109 = vmatpush1.msra.mxu0 %v49
    %110 = vmatprep.subr.mxu0 0.0
    %111 = vmatpush2.msra.mxu0 0.0
    %112 = vmatprep.subr.mxu0 0.0
    %113 = vmatpush2.msra.mxu0 0.0
    %114 = vmatprep.subr.mxu0 0.0
    %115 = vmatpush2.msra.mxu0 0.0
    %116 = vmatprep.subr.mxu0 0.0
    %117 = vmatpush2.msra.mxu0 0.0
    %118 = vmatprep.subr.mxu0 0.0
    %119 = vmatpush2.msra.mxu0 0.0
    %120 = vmatprep.subr.mxu0 0.0
    %121 = vmatpush2.msra.mxu0 0.0
    %122 = vmatprep.subr.mxu0 0.0
    %123 = vmatpush2.msra.mxu0 0.0
    %124 = vmatprep.subr.mxu0 0.0
    %125 = vmatpush2.msra.mxu0 0.0
    %126 = vmatprep.subr.mxu0 0.0
    %127 = vmatpush2.msra.mxu0 0.0
    %128 = vmatprep.subr.mxu0 0.0
    %129 = vmatpush2.msra.mxu0 0.0
    %130 = vmatprep.subr.mxu0 0.0
    %131 = vmatpush2.msra.mxu0 0.0
    %132 = vmatprep.subr.mxu0 0.0
    %133 = vmatpush2.msra.mxu0 0.0
    %134 = vmatprep.subr.mxu0 0.0
    %135 = vmatpush2.msra.mxu0 0.0
    %136 = vmatprep.subr.mxu0 0.0
    %137 = vmatpush2.msra.mxu0 0.0
    %138 = vmatprep.subr.mxu0 0.0
    %139 = vmatpush2.msra.mxu0 0.0
    %140 = vmatprep.subr.mxu0 0.0
    %141 = vmatpush2.msra.mxu0 0.0
    %142 = vmatprep.mubr.f32.mxu0 0.0
    %143 = vmatmul.mubr.f32.gmra.mxu0 %v69
    %v144 = vpop.f32.mrf.mxu0
    %v145 = vadd.f32 %v60, %v144
    %v146 = vpop.f32.mrf.mxu0
    %v147 = vadd.f32 %v64, %v146
    %148 = vdwg.mxu0
    %v149 = vmax.f32 %v145, 0.0
    %v150 = vmax.f32 %v147, 0.0
    %v151 = vld [vmem:[#allocation4] sm:$0xff]
    %v152 = vld [vmem:[#allocation4 + $0x8] sm:$0xff]
    %v153 = vld [vmem:[#allocation4 + $0x10] sm:$0xff]
    %v154 = vld [vmem:[#allocation4 + $0x18] sm:$0xff]
    %v155 = vld [vmem:[#allocation4 + $0x20] sm:$0xff]
    %v156 = vld [vmem:[#allocation4 + $0x28] sm:$0xff]
    %v157 = vld [vmem:[#allocation4 + $0x30] sm:$0xff]
    %v158 = vld [vmem:[#allocation4 + $0x38] sm:$0xff]
    %v159 = vld [vmem:[#allocation4 + $0x40] sm:$0xff]
    %v160 = vld [vmem:[#allocation4 + $0x48] sm:$0xff]
    %v161 = vld [vmem:[#allocation4 + $0x50] sm:$0xff]
    %v162 = vld [vmem:[#allocation4 + $0x58] sm:$0xff]
    %v163 = vld [vmem:[#allocation4 + $0x60] sm:$0xff]
    %v164 = vld [vmem:[#allocation4 + $0x68] sm:$0xff]
    %v165 = vld [vmem:[#allocation4 + $0x70] sm:$0xff]
    %v166 = vld [vmem:[#allocation4 + $0x78] sm:$0xff]
    %v167 = vld [vmem:[#allocation4 + $0x80] sm:$0xff]
    %v168 = vld [vmem:[#allocation4 + $0x88] sm:$0xff]
    %v169 = vld [vmem:[#allocation4 + $0x90] sm:$0xff]
    %v170 = vld [vmem:[#allocation4 + $0x98] sm:$0xff]
    %v171 = vld [vmem:[#allocation4 + $0xa0] sm:$0xff]
    %v172 = vld [vmem:[#allocation4 + $0xa8] sm:$0xff]
    %v173 = vld [vmem:[#allocation4 + $0xb0] sm:$0xff]
    %v174 = vld [vmem:[#allocation4 + $0xb8] sm:$0xff]
    %v175 = vld [vmem:[#allocation4 + $0xc0] sm:$0xff]
    %v176 = vld [vmem:[#allocation4 + $0xc8] sm:$0xff]
    %v177 = vld [vmem:[#allocation4 + $0xd0] sm:$0xff]
    %v178 = vld [vmem:[#allocation4 + $0xd8] sm:$0xff]
    %v179 = vld [vmem:[#allocation4 + $0xe0] sm:$0xff]
    %v180 = vld [vmem:[#allocation4 + $0xe8] sm:$0xff]
    %v181 = vld [vmem:[#allocation4 + $0xf0] sm:$0xff]
    %v182 = vld [vmem:[#allocation4 + $0xf8] sm:$0xff]
    %v183 = vld [vmem:[%s4] sm:$0x1]
    %v185 = vlaneseq
    %v186 = vshrl.u32 %v185, 7
    %v187 = vsub.s32 0, %v186
    %v188 = vrot.slane %v183, %v187
    %190 = vmatprep.subr.mxu0 0.0
    %191 = vmatpush1.msra.mxu0 %v166
    %192 = vmatprep.subr.mxu0 0.0
    %193 = vmatpush1.msra.mxu0 %v165
    %194 = vmatprep.subr.mxu0 0.0
    %195 = vmatpush1.msra.mxu0 %v164
    %196 = vmatprep.subr.mxu0 0.0
    %197 = vmatpush1.msra.mxu0 %v163
    %198 = vmatprep.subr.mxu0 0.0
    %199 = vmatpush1.msra.mxu0 %v162
    %200 = vmatprep.subr.mxu0 0.0
    %201 = vmatpush1.msra.mxu0 %v161
    %202 = vmatprep.subr.mxu0 0.0
    %203 = vmatpush1.msra.mxu0 %v160
    %204 = vmatprep.subr.mxu0 0.0
    %205 = vmatpush1.msra.mxu0 %v159
    %206 = vmatprep.subr.mxu0 0.0
    %207 = vmatpush1.msra.mxu0 %v158
    %208 = vmatprep.subr.mxu0 0.0
    %209 = vmatpush1.msra.mxu0 %v157
    %210 = vmatprep.subr.mxu0 0.0
    %211 = vmatpush1.msra.mxu0 %v156
    %212 = vmatprep.subr.mxu0 0.0
    %213 = vmatpush1.msra.mxu0 %v155
    %214 = vmatprep.subr.mxu0 0.0
    %215 = vmatpush1.msra.mxu0 %v154
    %216 = vmatprep.subr.mxu0 0.0
    %217 = vmatpush1.msra.mxu0 %v153
    %218 = vmatprep.subr.mxu0 0.0
    %219 = vmatpush1.msra.mxu0 %v152
    %220 = vmatprep.subr.mxu0 0.0
    %221 = vmatpush1.msra.mxu0 %v151
    %222 = vmatprep.subr.mxu0 0.0
    %223 = vmatpush2.msra.mxu0 %v182
    %224 = vmatprep.subr.mxu0 0.0
    %225 = vmatpush2.msra.mxu0 %v181
    %226 = vmatprep.subr.mxu0 0.0
    %227 = vmatpush2.msra.mxu0 %v180
    %228 = vmatprep.subr.mxu0 0.0
    %229 = vmatpush2.msra.mxu0 %v179
    %230 = vmatprep.subr.mxu0 0.0
    %231 = vmatpush2.msra.mxu0 %v178
    %232 = vmatprep.subr.mxu0 0.0
    %233 = vmatpush2.msra.mxu0 %v177
    %234 = vmatprep.subr.mxu0 0.0
    %235 = vmatpush2.msra.mxu0 %v176
    %236 = vmatprep.subr.mxu0 0.0
    %237 = vmatpush2.msra.mxu0 %v175
    %238 = vmatprep.subr.mxu0 0.0
    %239 = vmatpush2.msra.mxu0 %v174
    %240 = vmatprep.subr.mxu0 0.0
    %241 = vmatpush2.msra.mxu0 %v173
    %242 = vmatprep.subr.mxu0 0.0
    %243 = vmatpush2.msra.mxu0 %v172
    %244 = vmatprep.subr.mxu0 0.0
    %245 = vmatpush2.msra.mxu0 %v171
    %246 = vmatprep.subr.mxu0 0.0
    %247 = vmatpush2.msra.mxu0 %v170
    %248 = vmatprep.subr.mxu0 0.0
    %249 = vmatpush2.msra.mxu0 %v169
    %250 = vmatprep.subr.mxu0 0.0
    %251 = vmatpush2.msra.mxu0 %v168
    %252 = vmatprep.subr.mxu0 0.0
    %253 = vmatpush2.msra.mxu0 %v167
    %254 = vmatprep.mubr.f32.mxu0 %v150
    %255 = vmatmul.mubr.f32.gmra.mxu0 %v149
    %v256 = vpop.f32.mrf.mxu0
    %v257 = vadd.f32 %v188, %v256
    %v258 = vpop.f32.mrf.mxu0
    %259 = vdwg.mxu0
    %260 = vst [vmem:[%s5] sm:$0xff] %v257
    // Predicated region
    $region30: #{my_sequential_forward.1} parent=1 // pred_check
      _
    $region31: #{my_sequential_forward.1} parent=1 // pred_check_branch
      %262 = sbr.rel (0) target = $region33
    $region32: #{my_sequential_forward.1} parent=1 // pred_region
      _
    $region33: #{my_sequential_forward.1} parent=1 // pred_fallthru
      _
    // Predicated region
    $region34: #{my_sequential_forward.1} parent=1 // pred_check
      _
    $region35: #{my_sequential_forward.1} parent=1 // pred_check_branch
      %264 = sbr.rel (0) target = $region37
    $region36: #{my_sequential_forward.1} parent=1 // pred_region
      _
    $region37: #{my_sequential_forward.1} parent=1 // pred_fallthru
      _
    %265 = vsyncpa [#allocation3], 1
    %266 = vsyncpa [#allocation5], 1

</llo_original>
